<compile_context>
chip_gen: v5e
topology: v5e:2x2
jax: 0.10.0
libtpu: 0.0.40
codegen_flags: <defaults>
</compile_context>

<pallas_src>
import jax
import jax.numpy as jnp
from jax.experimental import pallas as pl
from jax.experimental.pallas import tpu as pltpu


def _round_up(x, m):
    return (x + m - 1) // m * m


def _vmem_limit_bytes():
    """Per-core VMEM limit, generation aware (v7x: 64 MiB, v5e/v6e: 128 MiB)."""
    phys = 64 << 20                       # conservative fallback == v7x per-TC
    try:
        info = pltpu.get_tpu_info()
        for name in ("vmem_capacity_bytes", "vmem_size_bytes", "vmem_bytes"):
            v = getattr(info, name, None)
            if v:
                phys = int(v)
                break
    except Exception:
        pass
    # Leave headroom for compiler scratch; ~96-112 MiB on 128 MiB parts,
    # ~48 MiB on v7x's 64 MiB parts.
    return int(min(phys * 3 // 4, 112 << 20))


def _plan_tiles(B, Dp, T, in_bytes, out_bytes, w_bytes, budget):
    """Pick (batch rows per step, time tile, padded T) under the VMEM budget."""
    t128 = _round_up(max(T, 1), 128)

    def est(bb, tt):
        io = 2 * bb * Dp * tt * (in_bytes + out_bytes)   # double-buffered x + out
        msk = 2 * bb * tt * 4                            # double-buffered mask tile
        wts = 4 * Dp * Dp * w_bytes + 16 * Dp            # 2 weights + 2 biases, 2 bufs
        tmp = 3 * Dp * tt * 4                            # f32 intermediates (h, y, cast)
        return io + msk + wts + tmp

    tt = 128
    for cand in (2048, 1024, 512, 256, 128):
        if cand <= t128 and est(1, cand) <= budget:
            tt = cand
            break
    t_pad = _round_up(T, tt)
    t_steps = t_pad // tt

    # Small per-step work: block several batch rows per grid step to amortize
    # the ~0.35 us/step overhead, but keep >= 2 grid steps when possible so
    # v7x megacore still has parallel work.
    bb = 1
    if Dp * tt < 512 * 1024:
        for d in range(1, B + 1):
            if B % d or est(d, tt) > budget:
                continue
            if (B // d) * t_steps >= 2 or B * t_steps < 2:
                bb = d
    return bb, tt, t_pad


def _mix_token_kernel(x_ref, m_ref, w1_ref, b1_ref, w2_ref, b2_ref, o_ref):
    """One (batch-block, time-tile) grid step.

    x_ref : (Bb, Dp, Tt)  features on sublanes, time on lanes (NCW layout)
    m_ref : (Bb, 1,  Tt)  masks[:, 0:1, :] tile (lane-dense, f32)
    w1_ref: (Dp, Dp)      fc1 weight with the (pool - I) operator pre-folded
    b1_ref: (Dp, 1)       fc1 bias (f32)
    w2_ref: (Dp, Dp)      fc2 weight
    b2_ref: (Dp, 1)       fc2 bias (f32)
    o_ref : (Bb, Dp, Tt)
    """
    w1 = w1_ref[...]
    w2 = w2_ref[...]
    b1 = b1_ref[...]
    b2 = b2_ref[...]
    # Static (small) unrolled loop over the batch rows of this block: each
    # iteration is two clean 2-D MXU matmuls with f32 accumulation.
    for bb in range(x_ref.shape[0]):
        x = x_ref[bb]                                               # (Dp, Tt)
        h = jnp.dot(w1, x, preferred_element_type=jnp.float32) + b1
        h = jnp.maximum(h, 0.0).astype(w2.dtype)                    # ReLU
        y = jnp.dot(w2, h, preferred_element_type=jnp.float32) + b2
        o_ref[bb] = (y * m_ref[bb]).astype(o_ref.dtype)


def chunk_poolformer_mix_token(x, masks, w1, b1, w2, b2, *,
                               pool_size=3, chunck_size=1,
                               compute_dtype=jnp.bfloat16, out_dtype=None):
    """x: (B, D, T), masks: (B, M, T).  Returns (B, D, T) in out_dtype."""
    B, D, T = x.shape
    assert pool_size % 2 == 1, "even pool_size would change the feature width"
    # chunck_size only pads T and crops it back; every op acts per-(b, t)
    # column over the feature axis, so padded rows never reach the output.
    del chunck_size
    out_dtype = x.dtype if out_dtype is None else jnp.dtype(out_dtype)

    # ---- fold AvgPool1d into fc1 -------------------------------------------
    # pool(x) - x over the feature axis == (P - I) @ x (zero padding,
    # count_include_pad=True), and fc1((P - I) x) = (w1 @ (P - I)) x + b1.
    # Build W1' = w1 @ (P - I) with exact f32 adds (banded operator), removing
    # one of the three per-tile MXU passes and the (D, Tt) temporary `z`.
    p = pool_size // 2
    w1f = w1.astype(jnp.float32)
    w1pad = jnp.pad(w1f, ((0, 0), (p, p)))
    w1p = sum(w1pad[:, k:k + D] for k in range(pool_size)) / pool_size - w1f

    # ---- tile planning (generation / VMEM aware) ----------------------------
    Dp = _round_up(D, 128)            # full 128-wide MXU tiles even for ragged D
    in_bytes = jnp.dtype(compute_dtype).itemsize
    w_bytes = in_bytes
    out_bytes = jnp.dtype(out_dtype).itemsize
    vmem_limit = _vmem_limit_bytes()
    Bb, Tt, T_pad = _plan_tiles(B, Dp, T, in_bytes, out_bytes, w_bytes,
                                budget=int(vmem_limit * 0.85))

    # ---- pad / cast operands -----------------------------------------------
    def pad2(a, rows, cols):
        return jnp.pad(a, ((0, rows - a.shape[0]), (0, cols - a.shape[1])))

    w1c = pad2(w1p, Dp, Dp).astype(compute_dtype)
    w2c = pad2(w2.astype(jnp.float32), Dp, Dp).astype(compute_dtype)
    b1c = pad2(b1.reshape(D, 1).astype(jnp.float32), Dp, 1)
    b2c = pad2(b2.reshape(D, 1).astype(jnp.float32), Dp, 1)

    xp = x
    if Dp != D or T_pad != T:
        # One extra XLA copy of x when D/T are ragged; buys lane-dense unmasked
        # stores and full-width MXU tiles in the kernel. Zero-padded features
        # produce exactly-zero padded outputs (b1/b2 pads are zero), and padded
        # time columns are cropped below.
        xp = jnp.pad(x, ((0, 0), (0, Dp - D), (0, T_pad - T)))
    xp = xp.astype(compute_dtype)

    m0 = masks[:, 0:1, :].astype(jnp.float32)        # epilogue stays f32
    if T_pad != T:
        m0 = jnp.pad(m0, ((0, 0), (0, 0), (0, T_pad - T)))

    grid = (B // Bb, T_pad // Tt)
    const = lambda b, t: (0, 0)   # constant index_map: block is revisited (not
                                  # re-fetched) across all grid steps.

    out = pl.pallas_call(
        _mix_token_kernel,
        out_shape=jax.ShapeDtypeStruct((B, Dp, T_pad), out_dtype),
        grid_spec=pltpu.PrefetchScalarGridSpec(
            num_scalar_prefetch=0,
            grid=grid,
            in_specs=[
                pl.BlockSpec((Bb, Dp, Tt), lambda b, t: (b, 0, t)),   # x
                pl.BlockSpec((Bb, 1, Tt), lambda b, t: (b, 0, t)),    # mask
                pl.BlockSpec((Dp, Dp), const),                        # W1' (pool folded)
                pl.BlockSpec((Dp, 1), const),                         # b1
                pl.BlockSpec((Dp, Dp), const),                        # w2
                pl.BlockSpec((Dp, 1), const),                         # b2
            ],
            out_specs=pl.BlockSpec((Bb, Dp, Tt), lambda b, t: (b, 0, t)),
        ),
        compiler_params=pltpu.CompilerParams(
            dimension_semantics=("parallel", "parallel"),
            vmem_limit_bytes=vmem_limit),
    )(xp, m0, w1c, b1c, w2c, b2c)

    if Dp != D or T_pad != T:
        out = out[:, :D, :T]
    return out


def _reference(x, masks, w1, b1, w2, b2, pool_size, chunck_size):
    """Pure-JAX mirror of the PyTorch forward (eval mode)."""
    B, D, T = x.shape
    xt = jnp.transpose(x, (0, 2, 1))                    # (B, T, D)
    pad_t = (-T) % chunck_size
    if pad_t:
        xt = jnp.pad(xt, ((0, 0), (0, pad_t), (0, 0)))
    # rearrange 'b (g n) d -> (b g) n d' only regroups rows; AvgPool1d still
    # pools over the last (feature) axis per row, so it is omitted here.
    p = pool_size // 2
    xp = jnp.pad(xt, ((0, 0), (0, 0), (p, p)))
    pooled = sum(xp[:, :, k:k + D] for k in range(pool_size)) / pool_size
    z = pooled - xt
    h = jnp.maximum(jnp.einsum('btd,od->bto', z, w1) + b1, 0.0)
    y = jnp.einsum('bth,oh->bto', h, w2) + b2
    y = jnp.transpose(y, (0, 2, 1))[:, :, :T]
    return y * masks[:, 0:1, :]


if __name__ == "__main__":
    # Small shapes consistent with the module: x is (batch, hidden_channels, T).
    # T=50 exercises the time padding path, D=32 the feature padding path,
    # B=4 the batch-blocking path.
    B, D, T = 4, 32, 50
    pool_size, chunck_size = 3, 4

    key = jax.random.PRNGKey(0)
    kx, km, k1, kb1, k2, kb2 = jax.random.split(key, 6)

    x = jax.random.normal(kx, (B, D, T), dtype=jnp.float32)
    masks = (jax.random.uniform(km, (B, 2, T)) > 0.3).astype(jnp.float32)

    # fc1 / fc2 parameters in PyTorch Linear convention: weight is (out, in).
    w1 = 0.1 * jax.random.normal(k1, (D, D), dtype=jnp.float32)
    b1 = 0.1 * jax.random.normal(kb1, (D,), dtype=jnp.float32)
    w2 = 0.1 * jax.random.normal(k2, (D, D), dtype=jnp.float32)
    b2 = 0.1 * jax.random.normal(kb2, (D,), dtype=jnp.float32)

    ref = _reference(x, masks, w1, b1, w2, b2, pool_size, chunck_size)

    # f32 operand path: tight tolerance.
    out_f32 = chunk_poolformer_mix_token(
        x, masks, w1, b1, w2, b2, pool_size=pool_size, chunck_size=chunck_size,
        compute_dtype=jnp.float32)
    out_f32 = jax.block_until_ready(out_f32)
    assert out_f32.shape == (B, D, T)
    err32 = float(jnp.max(jnp.abs(out_f32 - ref)))
    assert jnp.allclose(out_f32, ref, atol=2e-4, rtol=2e-4), err32

    # bf16 operand path (default): halved HBM streams, bf16 MXU rate.
    out_bf16 = chunk_poolformer_mix_token(
        x, masks, w1, b1, w2, b2, pool_size=pool_size, chunck_size=chunck_size)
    out_bf16 = jax.block_until_ready(out_bf16)
    assert out_bf16.shape == (B, D, T)
    err16 = float(jnp.max(jnp.abs(out_bf16 - ref)))
    assert jnp.allclose(out_bf16, ref, atol=5e-2, rtol=5e-2), err16

    print("KERNEL_OK")
</pallas_src>

<mosaic_0001>
module attributes {stable_mosaic.version = 11 : i64} {
  func.func @_mix_token_kernel(%arg0: i32, %arg1: i32, %arg2: memref<2x128x128xf32, #tpu.memory_space<vmem>>, %arg3: memref<2x1x128xf32, #tpu.memory_space<vmem>>, %arg4: memref<128x128xf32, #tpu.memory_space<vmem>>, %arg5: memref<128x1xf32, #tpu.memory_space<vmem>>, %arg6: memref<128x128xf32, #tpu.memory_space<vmem>>, %arg7: memref<128x1xf32, #tpu.memory_space<vmem>>, %arg8: memref<2x128x128xf32, #tpu.memory_space<vmem>>) attributes {dimension_semantics = [#tpu.dimension_semantics<parallel>, #tpu.dimension_semantics<parallel>], iteration_bounds = array<i64: 2, 1>, scalar_prefetch = 0 : i64, scratch_operands = 0 : i64, tpu.core_type = #tpu.core_type<tc>, window_params = [{transform_indices = @transform_0, window_bounds = array<i64: 2, 128, 128>}, {transform_indices = @transform_1, window_bounds = array<i64: 2, 1, 128>}, {pipeline_mode = #tpu.pipeline_mode<synchronous>, transform_indices = @transform_2, window_bounds = array<i64: 128, 128>}, {pipeline_mode = #tpu.pipeline_mode<synchronous>, transform_indices = @transform_3, window_bounds = array<i64: 128, 1>}, {pipeline_mode = #tpu.pipeline_mode<synchronous>, transform_indices = @transform_4, window_bounds = array<i64: 128, 128>}, {pipeline_mode = #tpu.pipeline_mode<synchronous>, transform_indices = @transform_5, window_bounds = array<i64: 128, 1>}, {transform_indices = @transform_6, window_bounds = array<i64: 2, 128, 128>}]} {
    %c0 = arith.constant 0 : index
    %c0_0 = arith.constant 0 : index
    %0 = vector.load %arg4[%c0, %c0_0] : memref<128x128xf32, #tpu.memory_space<vmem>>, vector<128x128xf32>
    %c0_1 = arith.constant 0 : index
    %c0_2 = arith.constant 0 : index
    %1 = vector.load %arg6[%c0_1, %c0_2] : memref<128x128xf32, #tpu.memory_space<vmem>>, vector<128x128xf32>
    %c0_3 = arith.constant 0 : index
    %c0_4 = arith.constant 0 : index
    %2 = vector.load %arg5[%c0_3, %c0_4] : memref<128x1xf32, #tpu.memory_space<vmem>>, vector<128x1xf32>
    %c0_5 = arith.constant 0 : index
    %c0_6 = arith.constant 0 : index
    %3 = vector.load %arg7[%c0_5, %c0_6] : memref<128x1xf32, #tpu.memory_space<vmem>>, vector<128x1xf32>
    %c0_7 = arith.constant 0 : index
    %c0_8 = arith.constant 0 : index
    %c0_9 = arith.constant 0 : index
    %4 = vector.load %arg2[%c0_7, %c0_8, %c0_9] : memref<2x128x128xf32, #tpu.memory_space<vmem>>, vector<1x128x128xf32>
    %5 = vector.shape_cast %4 : vector<1x128x128xf32> to vector<128x128xf32>
    %cst = arith.constant dense<0.000000e+00> : vector<128x128xf32>
    %6 = tpu.matmul %0, %5, %cst {dimension_numbers = #tpu.dot_dimension_numbers<[1], [0], [0], [1], [0, 0, 1, 1], [], []>} : vector<128x128xf32>, vector<128x128xf32>, vector<128x128xf32> -> vector<128x128xf32>
    %7 = vector.broadcast %2 : vector<128x1xf32> to vector<128x128xf32>
    %8 = arith.addf %6, %7 : vector<128x128xf32>
    %cst_10 = arith.constant 0.000000e+00 : f32
    %9 = vector.broadcast %cst_10 : f32 to vector<128x128xf32>
    %10 = arith.maximumf %8, %9 : vector<128x128xf32>
    %cst_11 = arith.constant dense<0.000000e+00> : vector<128x128xf32>
    %11 = tpu.matmul %1, %10, %cst_11 {dimension_numbers = #tpu.dot_dimension_numbers<[1], [0], [0], [1], [0, 0, 1, 1], [], []>} : vector<128x128xf32>, vector<128x128xf32>, vector<128x128xf32> -> vector<128x128xf32>
    %12 = vector.broadcast %3 : vector<128x1xf32> to vector<128x128xf32>
    %13 = arith.addf %11, %12 : vector<128x128xf32>
    %c0_12 = arith.constant 0 : index
    %c0_13 = arith.constant 0 : index
    %c0_14 = arith.constant 0 : index
    %14 = vector.load %arg3[%c0_12, %c0_13, %c0_14] : memref<2x1x128xf32, #tpu.memory_space<vmem>>, vector<1x1x128xf32>
    %15 = vector.shape_cast %14 : vector<1x1x128xf32> to vector<1x128xf32>
    %16 = vector.broadcast %15 : vector<1x128xf32> to vector<128x128xf32>
    %17 = arith.mulf %13, %16 : vector<128x128xf32>
    %c0_15 = arith.constant 0 : index
    %c0_16 = arith.constant 0 : index
    %c0_17 = arith.constant 0 : index
    %18 = vector.load %arg8[%c0_15, %c0_16, %c0_17] : memref<2x128x128xf32, #tpu.memory_space<vmem>>, vector<1x128x128xf32>
    %19 = vector.shape_cast %18 : vector<1x128x128xf32> to vector<128x128xf32>
    %20 = vector.shape_cast %17 : vector<128x128xf32> to vector<1x128x128xf32>
    tpu.vector_store %arg8[%c0_15, %c0_16, %c0_17], %20 {strides = array<i32>} : memref<2x128x128xf32, #tpu.memory_space<vmem>>, vector<1x128x128xf32>,
    %c1 = arith.constant 1 : index
    %c0_18 = arith.constant 0 : index
    %c0_19 = arith.constant 0 : index
    %21 = vector.load %arg2[%c1, %c0_18, %c0_19] : memref<2x128x128xf32, #tpu.memory_space<vmem>>, vector<1x128x128xf32>
    %22 = vector.shape_cast %21 : vector<1x128x128xf32> to vector<128x128xf32>
    %cst_20 = arith.constant dense<0.000000e+00> : vector<128x128xf32>
    %23 = tpu.matmul %0, %22, %cst_20 {dimension_numbers = #tpu.dot_dimension_numbers<[1], [0], [0], [1], [0, 0, 1, 1], [], []>} : vector<128x128xf32>, vector<128x128xf32>, vector<128x128xf32> -> vector<128x128xf32>
    %24 = vector.broadcast %2 : vector<128x1xf32> to vector<128x128xf32>
    %25 = arith.addf %23, %24 : vector<128x128xf32>
    %cst_21 = arith.constant 0.000000e+00 : f32
    %26 = vector.broadcast %cst_21 : f32 to vector<128x128xf32>
    %27 = arith.maximumf %25, %26 : vector<128x128xf32>
    %cst_22 = arith.constant dense<0.000000e+00> : vector<128x128xf32>
    %28 = tpu.matmul %1, %27, %cst_22 {dimension_numbers = #tpu.dot_dimension_numbers<[1], [0], [0], [1], [0, 0, 1, 1], [], []>} : vector<128x128xf32>, vector<128x128xf32>, vector<128x128xf32> -> vector<128x128xf32>
    %29 = vector.broadcast %3 : vector<128x1xf32> to vector<128x128xf32>
    %30 = arith.addf %28, %29 : vector<128x128xf32>
    %c1_23 = arith.constant 1 : index
    %c0_24 = arith.constant 0 : index
    %c0_25 = arith.constant 0 : index
    %31 = vector.load %arg3[%c1_23, %c0_24, %c0_25] : memref<2x1x128xf32, #tpu.memory_space<vmem>>, vector<1x1x128xf32>
    %32 = vector.shape_cast %31 : vector<1x1x128xf32> to vector<1x128xf32>
    %33 = vector.broadcast %32 : vector<1x128xf32> to vector<128x128xf32>
    %34 = arith.mulf %30, %33 : vector<128x128xf32>
    %c1_26 = arith.constant 1 : index
    %c0_27 = arith.constant 0 : index
    %c0_28 = arith.constant 0 : index
    %35 = vector.load %arg8[%c1_26, %c0_27, %c0_28] : memref<2x128x128xf32, #tpu.memory_space<vmem>>, vector<1x128x128xf32>
    %36 = vector.shape_cast %35 : vector<1x128x128xf32> to vector<128x128xf32>
    %37 = vector.shape_cast %34 : vector<128x128xf32> to vector<1x128x128xf32>
    tpu.vector_store %arg8[%c1_26, %c0_27, %c0_28], %37 {strides = array<i32>} : memref<2x128x128xf32, #tpu.memory_space<vmem>>, vector<1x128x128xf32>,
    return
  }
  func.func @transform_0(%arg0: i32, %arg1: i32) -> (i32, i32, i32) {
    %c0_i32 = arith.constant 0 : i32
    %c0_i32_0 = arith.constant 0 : i32
    return %arg0, %c0_i32, %arg1 : i32, i32, i32
  }
  func.func @transform_1(%arg0: i32, %arg1: i32) -> (i32, i32, i32) {
    %c0_i32 = arith.constant 0 : i32
    %c0_i32_0 = arith.constant 0 : i32
    return %arg0, %c0_i32, %arg1 : i32, i32, i32
  }
  func.func @transform_2(%arg0: i32, %arg1: i32) -> (i32, i32) {
    %c0_i32 = arith.constant 0 : i32
    %c0_i32_0 = arith.constant 0 : i32
    %c0_i32_1 = arith.constant 0 : i32
    return %c0_i32, %c0_i32_0 : i32, i32
  }
  func.func @transform_3(%arg0: i32, %arg1: i32) -> (i32, i32) {
    %c0_i32 = arith.constant 0 : i32
    %c0_i32_0 = arith.constant 0 : i32
    %c0_i32_1 = arith.constant 0 : i32
    return %c0_i32, %c0_i32_0 : i32, i32
  }
  func.func @transform_4(%arg0: i32, %arg1: i32) -> (i32, i32) {
    %c0_i32 = arith.constant 0 : i32
    %c0_i32_0 = arith.constant 0 : i32
    %c0_i32_1 = arith.constant 0 : i32
    return %c0_i32, %c0_i32_0 : i32, i32
  }
  func.func @transform_5(%arg0: i32, %arg1: i32) -> (i32, i32) {
    %c0_i32 = arith.constant 0 : i32
    %c0_i32_0 = arith.constant 0 : i32
    %c0_i32_1 = arith.constant 0 : i32
    return %c0_i32, %c0_i32_0 : i32, i32
  }
  func.func @transform_6(%arg0: i32, %arg1: i32) -> (i32, i32, i32) {
    %c0_i32 = arith.constant 0 : i32
    %c0_i32_0 = arith.constant 0 : i32
    return %arg0, %c0_i32, %arg1 : i32, i32, i32
  }
}

</mosaic_0001>

<llo_original>
// kernel: tpu_custom_call.1
$region0: #{tpu_custom_call.1}
  #allocation0 [shape = 'u32[]', space=smem, size = 0x4, offset = 0x4, fixed_abs, tag = 'smem constant byte address 0x4 - core index']
  #allocation1 [shape = 'u32[72,128]{1,0:T(1,128)}', space=vmem, size = 0x9000, scoped, tag = 'internal scratch']
  %s0 = inlined_call_operand.hbm [shape: f32[4,128,128], index: 0, kind: input, shape index: {}]
  %s1 = inlined_call_operand.hbm [shape: f32[4,1,128], index: 1, kind: input, shape index: {}]
  %s2 = inlined_call_operand.vmem [shape: f32[128,128], index: 2, kind: input, shape index: {}]
  %s3 = inlined_call_operand.vmem [shape: f32[128,1], index: 3, kind: input, shape index: {}]
  %s4 = inlined_call_operand.vmem [shape: f32[128,128], index: 4, kind: input, shape index: {}]
  %s5 = inlined_call_operand.vmem [shape: f32[128,1], index: 5, kind: input, shape index: {}]
  %s6 = inlined_call_operand.hbm [shape: f32[4,128,128], index: 6, kind: output, shape index: {}]
  %s7 = sld [smem:[#allocation0]]
  $region65: #{tpu_custom_call.1} parent=0
    _
  %s9 = ssub.s32 1, %s7
  %s10 = scalar_select 0, %s9, %s7
  $region1: #{tpu_custom_call.1} parent=0
    #allocation2 [shape = 'u8[262144]{0}', space=vmem, size = 0x40000, scoped, tag = 'input window, operand 0']
    #allocation3 [shape = 's32[2]{0}', space=sflag, size = 0x8, scoped, tag = 'scoped memory for tpu_custom_call.1']
    #allocation4 [shape = 's32[2]{0}', space=sflag, size = 0x8, scoped, tag = 'scoped memory for tpu_custom_call.1']
    #allocation5 [shape = 'u8[2048]{0}', space=vmem, size = 0x800, scoped, tag = 'input window, operand 1']
    #allocation6 [shape = 's32[2]{0}', space=sflag, size = 0x8, scoped, tag = 'scoped memory for tpu_custom_call.1']
    #allocation7 [shape = 'u8[262144]{0}', space=vmem, size = 0x40000, scoped, tag = 'output window, operand 0']
    %11 = vsyncpa [#allocation3], 0
    %s12 = scalar_lea.sflag [#allocation3], 1
    %13 = vsyncpa %s12, 0
    %14 = vsyncpa [#allocation6], 0
    %s15 = scalar_lea.sflag [#allocation6], 1
    %16 = vsyncpa %s15, 0
    %17 = vsyncpa [#allocation4], 0
    %s18 = scalar_lea.sflag [#allocation4], 1
    %19 = vsyncpa %s18, 0
    loop: start=0, step=1, limit=4
    $region2: #{tpu_custom_call.1} parent=1 // loop_pre_header
      _
    $region3: #{tpu_custom_call.1} parent=1 // loop_header
      %s21 = sphi 0, %s25
      %p22 = scmp.ge.s32.totalorder %s21, 4
      %s28 = sphi 0, %s40
      %s29 = sphi 0, %s36
      %s30 = sphi 0, %s28
      %s31 = sphi 0, %s29
      %s32 = sphi 0, %s30
      %s33 = sphi 0, %s31
      %s45 = sphi 0, %s47
      %s48 = sphi 0, %s45
      %s49 = sphi 0, %s48
      %s65 = sphi 0, %s49
      %s73 = sphi 0, %s75
      %s76 = sphi 0, %s73
      %s77 = sphi 0, %s76
      %s93 = sphi 0, %s77
      %s97 = sphi 0, %s97
      %s99 = sphi 0, %s97
      %s100 = sphi 0, %s99
      %s114 = sphi 0, %s100
      %s118 = sphi 0, %s118
      %s120 = sphi 0, %s118
      %s121 = sphi 0, %s120
      %s135 = sphi 0, %s121
      %s139 = sphi 0, %s139
      %s141 = sphi 0, %s139
      %s142 = sphi 0, %s141
      %s156 = sphi 0, %s142
      %s160 = sphi 0, %s160
      %s162 = sphi 0, %s160
      %s163 = sphi 0, %s162
      %s177 = sphi 0, %s163
      %s185 = sphi 0, %s187
      %s188 = sphi 0, %s185
      %s189 = sphi 0, %s188
      %s205 = sphi 0, %s189
    $region4: #{tpu_custom_call.1} parent=1 // loop_header_branch
      %24 = sbr.rel (%p22) target = $region8
    $region5: #{tpu_custom_call.1} parent=1 // loop_body
      %s26 = ssub.s32 %s21, 1
      %s27 = ssub.s32 %s21, 2
      %s34 = sadd.s32 1, %s29
      %p35 = scmp.ge.s32.totalorder %s34, 1
      %s36 = scalar_select %p35, 0, %s34
      %s37 = sadd.s32 1, %s28
      %s38 = scalar_select %p35, %s37, %s28
      %p39 = scmp.ge.s32.totalorder %s38, 2
      %s40 = scalar_select %p39, 0, %s38
      %s41 = ssub.s32 %s28, %s40
      %s42 = ssub.s32 %s29, %s36
      %s43 = sor.u32 %s41, %s42
      %p44 = scmp.eq.s32.totalorder %s43, 0
      %s46 = sadd.s32 %s45, 1
      %s47 = scalar_select %p44, %s45, %s46
      %p50 = pneg %p44
      %p51 = scmp.eq.s32.totalorder %s21, 1
      %p52 = por %p50, %p51
      %p53 = scmp.ne.s32.totalorder %s45, %s48
      %p54 = scmp.eq.s32.totalorder %s21, 0
      %p55 = por %p53, %p54
      %p56 = scmp.ne.s32.totalorder %s45, %s48
      %p57 = scmp.eq.s32.totalorder %s26, 1
      %p58 = por %p56, %p57
      %p59 = scmp.ne.s32.totalorder %s48, %s49
      %p60 = scmp.eq.s32.totalorder %s26, 0
      %p61 = por %p59, %p60
      %p62 = scmp.ne.s32.totalorder %s48, %s49
      %p63 = scmp.eq.s32.totalorder %s27, 1
      %p64 = por %p62, %p63
      %p66 = scmp.ne.s32.totalorder %s49, %s65
      %p67 = scmp.eq.s32.totalorder %s27, 0
      %p68 = por %p66, %p67
      %s69 = ssub.s32 %s28, %s40
      %s70 = ssub.s32 %s29, %s36
      %s71 = sor.u32 %s69, %s70
      %p72 = scmp.eq.s32.totalorder %s71, 0
      %s74 = sadd.s32 %s73, 1
      %s75 = scalar_select %p72, %s73, %s74
      %p78 = pneg %p72
      %p79 = scmp.eq.s32.totalorder %s21, 1
      %p80 = por %p78, %p79
      %p81 = scmp.ne.s32.totalorder %s73, %s76
      %p82 = scmp.eq.s32.totalorder %s21, 0
      %p83 = por %p81, %p82
      %p84 = scmp.ne.s32.totalorder %s73, %s76
      %p85 = scmp.eq.s32.totalorder %s26, 1
      %p86 = por %p84, %p85
      %p87 = scmp.ne.s32.totalorder %s76, %s77
      %p88 = scmp.eq.s32.totalorder %s26, 0
      %p89 = por %p87, %p88
      %p90 = scmp.ne.s32.totalorder %s76, %s77
      %p91 = scmp.eq.s32.totalorder %s27, 1
      %p92 = por %p90, %p91
      %p94 = scmp.ne.s32.totalorder %s77, %s93
      %p95 = scmp.eq.s32.totalorder %s27, 0
      %p96 = por %p94, %p95
      %s98 = sadd.s32 %s97, 1
      %p101 = scmp.eq.s32.totalorder %s21, 1
      %p102 = scmp.ne.s32.totalorder %s97, %s99
      %p103 = scmp.eq.s32.totalorder %s21, 0
      %p104 = por %p102, %p103
      %p105 = scmp.ne.s32.totalorder %s97, %s99
      %p106 = scmp.eq.s32.totalorder %s26, 1
      %p107 = por %p105, %p106
      %p108 = scmp.ne.s32.totalorder %s99, %s100
      %p109 = scmp.eq.s32.totalorder %s26, 0
      %p110 = por %p108, %p109
      %p111 = scmp.ne.s32.totalorder %s99, %s100
      %p112 = scmp.eq.s32.totalorder %s27, 1
      %p113 = por %p111, %p112
      %p115 = scmp.ne.s32.totalorder %s100, %s114
      %p116 = scmp.eq.s32.totalorder %s27, 0
      %p117 = por %p115, %p116
      %s119 = sadd.s32 %s118, 1
      %p122 = scmp.eq.s32.totalorder %s21, 1
      %p123 = scmp.ne.s32.totalorder %s118, %s120
      %p124 = scmp.eq.s32.totalorder %s21, 0
      %p125 = por %p123, %p124
      %p126 = scmp.ne.s32.totalorder %s118, %s120
      %p127 = scmp.eq.s32.totalorder %s26, 1
      %p128 = por %p126, %p127
      %p129 = scmp.ne.s32.totalorder %s120, %s121
      %p130 = scmp.eq.s32.totalorder %s26, 0
      %p131 = por %p129, %p130
      %p132 = scmp.ne.s32.totalorder %s120, %s121
      %p133 = scmp.eq.s32.totalorder %s27, 1
      %p134 = por %p132, %p133
      %p136 = scmp.ne.s32.totalorder %s121, %s135
      %p137 = scmp.eq.s32.totalorder %s27, 0
      %p138 = por %p136, %p137
      %s140 = sadd.s32 %s139, 1
      %p143 = scmp.eq.s32.totalorder %s21, 1
      %p144 = scmp.ne.s32.totalorder %s139, %s141
      %p145 = scmp.eq.s32.totalorder %s21, 0
      %p146 = por %p144, %p145
      %p147 = scmp.ne.s32.totalorder %s139, %s141
      %p148 = scmp.eq.s32.totalorder %s26, 1
      %p149 = por %p147, %p148
      %p150 = scmp.ne.s32.totalorder %s141, %s142
      %p151 = scmp.eq.s32.totalorder %s26, 0
      %p152 = por %p150, %p151
      %p153 = scmp.ne.s32.totalorder %s141, %s142
      %p154 = scmp.eq.s32.totalorder %s27, 1
      %p155 = por %p153, %p154
      %p157 = scmp.ne.s32.totalorder %s142, %s156
      %p158 = scmp.eq.s32.totalorder %s27, 0
      %p159 = por %p157, %p158
      %s161 = sadd.s32 %s160, 1
      %p164 = scmp.eq.s32.totalorder %s21, 1
      %p165 = scmp.ne.s32.totalorder %s160, %s162
      %p166 = scmp.eq.s32.totalorder %s21, 0
      %p167 = por %p165, %p166
      %p168 = scmp.ne.s32.totalorder %s160, %s162
      %p169 = scmp.eq.s32.totalorder %s26, 1
      %p170 = por %p168, %p169
      %p171 = scmp.ne.s32.totalorder %s162, %s163
      %p172 = scmp.eq.s32.totalorder %s26, 0
      %p173 = por %p171, %p172
      %p174 = scmp.ne.s32.totalorder %s162, %s163
      %p175 = scmp.eq.s32.totalorder %s27, 1
      %p176 = por %p174, %p175
      %p178 = scmp.ne.s32.totalorder %s163, %s177
      %p179 = scmp.eq.s32.totalorder %s27, 0
      %p180 = por %p178, %p179
      %s181 = ssub.s32 %s28, %s40
      %s182 = ssub.s32 %s29, %s36
      %s183 = sor.u32 %s181, %s182
      %p184 = scmp.eq.s32.totalorder %s183, 0
      %s186 = sadd.s32 %s185, 1
      %s187 = scalar_select %p184, %s185, %s186
      %p190 = pneg %p184
      %p191 = scmp.eq.s32.totalorder %s21, 1
      %p192 = por %p190, %p191
      %p193 = scmp.ne.s32.totalorder %s185, %s188
      %p194 = scmp.eq.s32.totalorder %s21, 0
      %p195 = por %p193, %p194
      %p196 = scmp.ne.s32.totalorder %s185, %s188
      %p197 = scmp.eq.s32.totalorder %s26, 1
      %p198 = por %p196, %p197
      %p199 = scmp.ne.s32.totalorder %s188, %s189
      %p200 = scmp.eq.s32.totalorder %s26, 0
      %p201 = por %p199, %p200
      %p202 = scmp.ne.s32.totalorder %s188, %s189
      %p203 = scmp.eq.s32.totalorder %s27, 1
      %p204 = por %p202, %p203
      %p206 = scmp.ne.s32.totalorder %s189, %s205
      %p207 = scmp.eq.s32.totalorder %s27, 0
      %p208 = por %p206, %p207
      %p209 = scmp.le.s32.totalorder 1, %s21
      %p210 = scmp.lt.s32.totalorder %s21, 3
      %p211 = pnand %p209, %p210
      %p212 = pneg %p211
      // Predicated region
      $region9: #{tpu_custom_call.1} parent=5 // pred_check
        _
      $region10: #{tpu_custom_call.1} parent=5 // pred_check_branch
        %214 = sbr.rel (%p211) target = $region12
      $region11: #{tpu_custom_call.1} parent=5 // pred_region
        %s215 = ssub.s32 %s21, 1
        // Predicated region
        $region13: #{tpu_custom_call.1} parent=11 // pred_check
          %p216 = pneg %p110
        $region14: #{tpu_custom_call.1} parent=11 // pred_check_branch
          %218 = sbr.rel (%p216) target = $region16
        $region15: #{tpu_custom_call.1} parent=11 // pred_region
          _
        $region16: #{tpu_custom_call.1} parent=11 // pred_fallthru
          _
        // Predicated region
        $region17: #{tpu_custom_call.1} parent=11 // pred_check
          %p219 = pneg %p131
        $region18: #{tpu_custom_call.1} parent=11 // pred_check_branch
          %221 = sbr.rel (%p219) target = $region20
        $region19: #{tpu_custom_call.1} parent=11 // pred_region
          _
        $region20: #{tpu_custom_call.1} parent=11 // pred_fallthru
          _
        // Predicated region
        $region21: #{tpu_custom_call.1} parent=11 // pred_check
          %p222 = pneg %p152
        $region22: #{tpu_custom_call.1} parent=11 // pred_check_branch
          %224 = sbr.rel (%p222) target = $region24
        $region23: #{tpu_custom_call.1} parent=11 // pred_region
          _
        $region24: #{tpu_custom_call.1} parent=11 // pred_fallthru
          _
        // Predicated region
        $region25: #{tpu_custom_call.1} parent=11 // pred_check
          %p225 = pneg %p173
        $region26: #{tpu_custom_call.1} parent=11 // pred_check_branch
          %227 = sbr.rel (%p225) target = $region28
        $region27: #{tpu_custom_call.1} parent=11 // pred_region
          _
        $region28: #{tpu_custom_call.1} parent=11 // pred_fallthru
          _
      $region12: #{tpu_custom_call.1} parent=5 // pred_fallthru
        _
      %p228 = scmp.lt.s32.totalorder %s21, 2
      // Predicated region
      $region29: #{tpu_custom_call.1} parent=5 // pred_check
        %p229 = pneg %p228
      $region30: #{tpu_custom_call.1} parent=5 // pred_check_branch
        %231 = sbr.rel (%p229) target = $region32
      $region31: #{tpu_custom_call.1} parent=5 // pred_region
        // Predicated region
        $region33: #{tpu_custom_call.1} parent=31 // pred_check
          %p232 = pneg %p55
        $region34: #{tpu_custom_call.1} parent=31 // pred_check_branch
          %234 = sbr.rel (%p232) target = $region36
        $region35: #{tpu_custom_call.1} parent=31 // pred_region
          %s235 = sand.u32 %s45, 1
          %s236 = scalar_lea.sflag [#allocation3], %s235
          %s237 = sand.u32 %s45, 1
          %s238 = smul.addr %s237, 256
          %s239 = scalar_lea.vmem [#allocation2], %s238
          %s240 = smul.u32 2, %s28
          %242 = vsyncadd %s236, 0
          %s243 = smul.addr %s240, 16
          %s244 = sadd.s32 %s29, %s243
          %s245 = smul.addr %s244, 8
          %s246 = scalar_lea.hbm %s0, %s245
          %s247 = sshll.u32 %s246, 4
          %s248 = int_to_ptr.hbm [resolvable:$true] %s247
          %s249 = sshll.u32 %s239, 4
          %s250 = int_to_ptr.vmem [resolvable:$true] %s249
          %255 = dma.hbm_to_vmem [thread:$0]  %s248, 4096, %s250, %s236, 128, 128, 8
        $region36: #{tpu_custom_call.1} parent=31 // pred_fallthru
          _
        // Predicated region
        $region37: #{tpu_custom_call.1} parent=31 // pred_check
          %p256 = pneg %p83
        $region38: #{tpu_custom_call.1} parent=31 // pred_check_branch
          %258 = sbr.rel (%p256) target = $region40
        $region39: #{tpu_custom_call.1} parent=31 // pred_region
          %s259 = sand.u32 %s73, 1
          %s260 = scalar_lea.sflag [#allocation6], %s259
          %s261 = sand.u32 %s73, 1
          %s262 = smul.addr %s261, 2
          %s263 = scalar_lea.vmem [#allocation5], %s262
          %s264 = smul.u32 2, %s28
          %266 = vsyncadd %s260, 0
          %s267 = sadd.s32 %s29, %s264
          %s268 = scalar_lea.hbm %s1, %s267
          %s269 = sshll.u32 %s268, 4
          %s270 = int_to_ptr.hbm [resolvable:$true] %s269
          %s271 = sshll.u32 %s263, 4
          %s272 = int_to_ptr.vmem [resolvable:$true] %s271
          %277 = dma.hbm_to_vmem [thread:$0]  %s270, 32, %s272, %s260, 16, 16, 1
        $region40: #{tpu_custom_call.1} parent=31 // pred_fallthru
          _
      $region32: #{tpu_custom_call.1} parent=5 // pred_fallthru
        _
      %p278 = scmp.le.s32.totalorder 1, %s21
      %p279 = scmp.lt.s32.totalorder %s21, 3
      %p280 = pnand %p278, %p279
      %p281 = pneg %p280
      // Predicated region
      $region41: #{tpu_custom_call.1} parent=5 // pred_check
        _
      $region42: #{tpu_custom_call.1} parent=5 // pred_check_branch
        %283 = sbr.rel (%p280) target = $region44
      $region43: #{tpu_custom_call.1} parent=5 // pred_region
        %s284 = ssub.s32 %s21, 1
        %s285 = sand.u32 %s48, 1
        %s286 = scalar_lea.sflag [#allocation3], %s285
        %s287 = sand.u32 %s48, 1
        %s288 = smul.addr %s287, 256
        %s289 = scalar_lea.vmem [#allocation2], %s288
        // Predicated region
        $region45: #{tpu_custom_call.1} parent=43 // pred_check
          %p290 = pneg %p61
        $region46: #{tpu_custom_call.1} parent=43 // pred_check_branch
          %292 = sbr.rel (%p290) target = $region48
        $region47: #{tpu_custom_call.1} parent=43 // pred_region
          %294 = dma.done %s286, 4096
        $region48: #{tpu_custom_call.1} parent=43 // pred_fallthru
          _
        %s295 = sand.u32 %s76, 1
        %s296 = scalar_lea.sflag [#allocation6], %s295
        %s297 = sand.u32 %s76, 1
        %s298 = smul.addr %s297, 2
        %s299 = scalar_lea.vmem [#allocation5], %s298
        // Predicated region
        $region49: #{tpu_custom_call.1} parent=43 // pred_check
          %p300 = pneg %p89
        $region50: #{tpu_custom_call.1} parent=43 // pred_check_branch
          %302 = sbr.rel (%p300) target = $region52
        $region51: #{tpu_custom_call.1} parent=43 // pred_region
          %304 = dma.done %s296, 32
        $region52: #{tpu_custom_call.1} parent=43 // pred_fallthru
          _
        %s305 = sand.u32 %s48, 1
        %s306 = scalar_lea.sflag [#allocation3], %s305
        %s307 = sand.u32 %s48, 1
        %s308 = smul.addr %s307, 256
        %s309 = scalar_lea.vmem [#allocation2], %s308
        %p310 = pneg %p61
        %p311 = pneg %p58
        %s312 = sand.u32 %s76, 1
        %s313 = scalar_lea.sflag [#allocation6], %s312
        %s314 = sand.u32 %s76, 1
        %s315 = smul.addr %s314, 2
        %s316 = scalar_lea.vmem [#allocation5], %s315
        %p317 = pneg %p89
        %p318 = pneg %p86
        %p319 = pneg %p110
        %p320 = pneg %p107
        %p321 = pneg %p131
        %p322 = pneg %p128
        %p323 = pneg %p152
        %p324 = pneg %p149
        %p325 = pneg %p173
        %p326 = pneg %p170
        %p327 = pneg %p201
        %p328 = pneg %p198
        %s329 = sand.u32 %s188, 1
        %s330 = scalar_lea.sflag [#allocation4], %s329
        %s331 = sand.u32 %s188, 1
        %s332 = smul.addr %s331, 256
        %s333 = scalar_lea.vmem [#allocation7], %s332
        %s334 = smul.u32 2, %s30
        %s335 = smul.u32 2, %s30
        %s336 = smul.u32 2, %s30
        %v337 = vld [vmem:[%s2] sm:$0xff]
        %v338 = vld [vmem:[%s2 + $0x8] sm:$0xff]
        %v339 = vld [vmem:[%s2 + $0x10] sm:$0xff]
        %v340 = vld [vmem:[%s2 + $0x18] sm:$0xff]
        %v341 = vld [vmem:[%s2 + $0x20] sm:$0xff]
        %v342 = vld [vmem:[%s2 + $0x28] sm:$0xff]
        %v343 = vld [vmem:[%s2 + $0x30] sm:$0xff]
        %v344 = vld [vmem:[%s2 + $0x38] sm:$0xff]
        %v345 = vld [vmem:[%s2 + $0x40] sm:$0xff]
        %v346 = vld [vmem:[%s2 + $0x48] sm:$0xff]
        %v347 = vld [vmem:[%s2 + $0x50] sm:$0xff]
        %v348 = vld [vmem:[%s2 + $0x58] sm:$0xff]
        %v349 = vld [vmem:[%s2 + $0x60] sm:$0xff]
        %v350 = vld [vmem:[%s2 + $0x68] sm:$0xff]
        %v351 = vld [vmem:[%s2 + $0x70] sm:$0xff]
        %v352 = vld [vmem:[%s2 + $0x78] sm:$0xff]
        %v353 = vld [vmem:[%s4] sm:$0xff]
        %v354 = vld [vmem:[%s4 + $0x8] sm:$0xff]
        %v355 = vld [vmem:[%s4 + $0x10] sm:$0xff]
        %v356 = vld [vmem:[%s4 + $0x18] sm:$0xff]
        %v357 = vld [vmem:[%s4 + $0x20] sm:$0xff]
        %v358 = vld [vmem:[%s4 + $0x28] sm:$0xff]
        %v359 = vld [vmem:[%s4 + $0x30] sm:$0xff]
        %v360 = vld [vmem:[%s4 + $0x38] sm:$0xff]
        %v361 = vld [vmem:[%s4 + $0x40] sm:$0xff]
        %v362 = vld [vmem:[%s4 + $0x48] sm:$0xff]
        %v363 = vld [vmem:[%s4 + $0x50] sm:$0xff]
        %v364 = vld [vmem:[%s4 + $0x58] sm:$0xff]
        %v365 = vld [vmem:[%s4 + $0x60] sm:$0xff]
        %v366 = vld [vmem:[%s4 + $0x68] sm:$0xff]
        %v367 = vld [vmem:[%s4 + $0x70] sm:$0xff]
        %v368 = vld [vmem:[%s4 + $0x78] sm:$0xff]
        %v369 = vld [vmem:[%s3] sm:$0xff]
        %v370 = vld [vmem:[%s3 + $0x8] sm:$0xff]
        %v371 = vld [vmem:[%s3 + $0x10] sm:$0xff]
        %v372 = vld [vmem:[%s3 + $0x18] sm:$0xff]
        %v373 = vld [vmem:[%s3 + $0x20] sm:$0xff]
        %v374 = vld [vmem:[%s3 + $0x28] sm:$0xff]
        %v375 = vld [vmem:[%s3 + $0x30] sm:$0xff]
        %v376 = vld [vmem:[%s3 + $0x38] sm:$0xff]
        %v377 = vld [vmem:[%s3 + $0x40] sm:$0xff]
        %v378 = vld [vmem:[%s3 + $0x48] sm:$0xff]
        %v379 = vld [vmem:[%s3 + $0x50] sm:$0xff]
        %v380 = vld [vmem:[%s3 + $0x58] sm:$0xff]
        %v381 = vld [vmem:[%s3 + $0x60] sm:$0xff]
        %v382 = vld [vmem:[%s3 + $0x68] sm:$0xff]
        %v383 = vld [vmem:[%s3 + $0x70] sm:$0xff]
        %v384 = vld [vmem:[%s3 + $0x78] sm:$0xff]
        %v385 = vld [vmem:[%s5] sm:$0xff]
        %v386 = vld [vmem:[%s5 + $0x8] sm:$0xff]
        %v387 = vld [vmem:[%s5 + $0x10] sm:$0xff]
        %v388 = vld [vmem:[%s5 + $0x18] sm:$0xff]
        %v389 = vld [vmem:[%s5 + $0x20] sm:$0xff]
        %v390 = vld [vmem:[%s5 + $0x28] sm:$0xff]
        %v391 = vld [vmem:[%s5 + $0x30] sm:$0xff]
        %v392 = vld [vmem:[%s5 + $0x38] sm:$0xff]
        %v393 = vld [vmem:[%s5 + $0x40] sm:$0xff]
        %v394 = vld [vmem:[%s5 + $0x48] sm:$0xff]
        %v395 = vld [vmem:[%s5 + $0x50] sm:$0xff]
        %v396 = vld [vmem:[%s5 + $0x58] sm:$0xff]
        %v397 = vld [vmem:[%s5 + $0x60] sm:$0xff]
        %v398 = vld [vmem:[%s5 + $0x68] sm:$0xff]
        %v399 = vld [vmem:[%s5 + $0x70] sm:$0xff]
        %v400 = vld [vmem:[%s5 + $0x78] sm:$0xff]
        %v401 = vld [vmem:[%s289] sm:$0xff]
        %v402 = vld [vmem:[%s289 + $0x8] sm:$0xff]
        %v403 = vld [vmem:[%s289 + $0x10] sm:$0xff]
        %v404 = vld [vmem:[%s289 + $0x18] sm:$0xff]
        %v405 = vld [vmem:[%s289 + $0x20] sm:$0xff]
        %v406 = vld [vmem:[%s289 + $0x28] sm:$0xff]
        %v407 = vld [vmem:[%s289 + $0x30] sm:$0xff]
        %v408 = vld [vmem:[%s289 + $0x38] sm:$0xff]
        %v409 = vld [vmem:[%s289 + $0x40] sm:$0xff]
        %v410 = vld [vmem:[%s289 + $0x48] sm:$0xff]
        %v411 = vld [vmem:[%s289 + $0x50] sm:$0xff]
        %v412 = vld [vmem:[%s289 + $0x58] sm:$0xff]
        %v413 = vld [vmem:[%s289 + $0x60] sm:$0xff]
        %v414 = vld [vmem:[%s289 + $0x68] sm:$0xff]
        %v415 = vld [vmem:[%s289 + $0x70] sm:$0xff]
        %v416 = vld [vmem:[%s289 + $0x78] sm:$0xff]
        %418 = vset.pattern.permute.xlu0 0
        %419 = vperm.xlu0 %418, %v369
        %v420 = vpop.permute.xlu0 %419
        %423 = vset.pattern.permute.xlu0 0
        %424 = vperm.xlu0 %423, %v370
        %v425 = vpop.permute.xlu0 %424
        %428 = vset.pattern.permute.xlu0 0
        %429 = vperm.xlu0 %428, %v371
        %v430 = vpop.permute.xlu0 %429
        %433 = vset.pattern.permute.xlu0 0
        %434 = vperm.xlu0 %433, %v372
        %v435 = vpop.permute.xlu0 %434
        %438 = vset.pattern.permute.xlu0 0
        %439 = vperm.xlu0 %438, %v373
        %v440 = vpop.permute.xlu0 %439
        %443 = vset.pattern.permute.xlu0 0
        %444 = vperm.xlu0 %443, %v374
        %v445 = vpop.permute.xlu0 %444
        %448 = vset.pattern.permute.xlu0 0
        %449 = vperm.xlu0 %448, %v375
        %v450 = vpop.permute.xlu0 %449
        %453 = vset.pattern.permute.xlu0 0
        %454 = vperm.xlu0 %453, %v376
        %v455 = vpop.permute.xlu0 %454
        %458 = vset.pattern.permute.xlu0 0
        %459 = vperm.xlu0 %458, %v377
        %v460 = vpop.permute.xlu0 %459
        %463 = vset.pattern.permute.xlu0 0
        %464 = vperm.xlu0 %463, %v378
        %v465 = vpop.permute.xlu0 %464
        %468 = vset.pattern.permute.xlu0 0
        %469 = vperm.xlu0 %468, %v379
        %v470 = vpop.permute.xlu0 %469
        %473 = vset.pattern.permute.xlu0 0
        %474 = vperm.xlu0 %473, %v380
        %v475 = vpop.permute.xlu0 %474
        %478 = vset.pattern.permute.xlu0 0
        %479 = vperm.xlu0 %478, %v381
        %v480 = vpop.permute.xlu0 %479
        %483 = vset.pattern.permute.xlu0 0
        %484 = vperm.xlu0 %483, %v382
        %v485 = vpop.permute.xlu0 %484
        %488 = vset.pattern.permute.xlu0 0
        %489 = vperm.xlu0 %488, %v383
        %v490 = vpop.permute.xlu0 %489
        %493 = vset.pattern.permute.xlu0 0
        %494 = vperm.xlu0 %493, %v384
        %v495 = vpop.permute.xlu0 %494
        %497 = vmatpush.msra.mxu0 %v416
        %498 = vmatpush.msra.mxu0 %v415
        %499 = vmatpush.msra.mxu0 %v414
        %500 = vmatpush.msra.mxu0 %v413
        %501 = vmatpush.msra.mxu0 %v412
        %502 = vmatpush.msra.mxu0 %v411
        %503 = vmatpush.msra.mxu0 %v410
        %504 = vmatpush.msra.mxu0 %v409
        %505 = vmatpush.msra.mxu0 %v408
        %506 = vmatpush.msra.mxu0 %v407
        %507 = vmatpush.msra.mxu0 %v406
        %508 = vmatpush.msra.mxu0 %v405
        %509 = vmatpush.msra.mxu0 %v404
        %510 = vmatpush.msra.mxu0 %v403
        %511 = vmatpush.msra.mxu0 %v402
        %512 = vmatpush.msra.mxu0 %v401
        %513 = vmatmul.f32.gmra.mxu0 %v337
        %v514 = vpop.f32.mrf.mxu0
        %v515 = vadd.f32 %v420, %v514
        %516 = vmatmul.f32.gmra.mxu0 %v338
        %v517 = vpop.f32.mrf.mxu0
        %v518 = vadd.f32 %v425, %v517
        %519 = vmatmul.f32.gmra.mxu0 %v339
        %v520 = vpop.f32.mrf.mxu0
        %v521 = vadd.f32 %v430, %v520
        %522 = vmatmul.f32.gmra.mxu0 %v340
        %v523 = vpop.f32.mrf.mxu0
        %v524 = vadd.f32 %v435, %v523
        %525 = vmatmul.f32.gmra.mxu0 %v341
        %v526 = vpop.f32.mrf.mxu0
        %v527 = vadd.f32 %v440, %v526
        %528 = vmatmul.f32.gmra.mxu0 %v342
        %v529 = vpop.f32.mrf.mxu0
        %v530 = vadd.f32 %v445, %v529
        %531 = vmatmul.f32.gmra.mxu0 %v343
        %v532 = vpop.f32.mrf.mxu0
        %v533 = vadd.f32 %v450, %v532
        %534 = vmatmul.f32.gmra.mxu0 %v344
        %v535 = vpop.f32.mrf.mxu0
        %v536 = vadd.f32 %v455, %v535
        %537 = vmatmul.f32.gmra.mxu0 %v345
        %v538 = vpop.f32.mrf.mxu0
        %v539 = vadd.f32 %v460, %v538
        %540 = vmatmul.f32.gmra.mxu0 %v346
        %v541 = vpop.f32.mrf.mxu0
        %v542 = vadd.f32 %v465, %v541
        %543 = vmatmul.f32.gmra.mxu0 %v347
        %v544 = vpop.f32.mrf.mxu0
        %v545 = vadd.f32 %v470, %v544
        %546 = vmatmul.f32.gmra.mxu0 %v348
        %v547 = vpop.f32.mrf.mxu0
        %v548 = vadd.f32 %v475, %v547
        %549 = vmatmul.f32.gmra.mxu0 %v349
        %v550 = vpop.f32.mrf.mxu0
        %v551 = vadd.f32 %v480, %v550
        %552 = vmatmul.f32.gmra.mxu0 %v350
        %v553 = vpop.f32.mrf.mxu0
        %v554 = vadd.f32 %v485, %v553
        %555 = vmatmul.f32.gmra.mxu0 %v351
        %v556 = vpop.f32.mrf.mxu0
        %v557 = vadd.f32 %v490, %v556
        %558 = vmatmul.f32.gmra.mxu0 %v352
        %v559 = vpop.f32.mrf.mxu0
        %v560 = vadd.f32 %v495, %v559
        %561 = vdwg.mxu0
        %v562 = vmax.f32 %v515, 0.0
        %v563 = vmax.f32 %v518, 0.0
        %v564 = vmax.f32 %v521, 0.0
        %v565 = vmax.f32 %v524, 0.0
        %v566 = vmax.f32 %v527, 0.0
        %v567 = vmax.f32 %v530, 0.0
        %v568 = vmax.f32 %v533, 0.0
        %v569 = vmax.f32 %v536, 0.0
        %v570 = vmax.f32 %v539, 0.0
        %v571 = vmax.f32 %v542, 0.0
        %v572 = vmax.f32 %v545, 0.0
        %v573 = vmax.f32 %v548, 0.0
        %v574 = vmax.f32 %v551, 0.0
        %v575 = vmax.f32 %v554, 0.0
        %v576 = vmax.f32 %v557, 0.0
        %v577 = vmax.f32 %v560, 0.0
        %579 = vset.pattern.permute.xlu0 0
        %580 = vperm.xlu0 %579, %v385
        %v581 = vpop.permute.xlu0 %580
        %584 = vset.pattern.permute.xlu0 0
        %585 = vperm.xlu0 %584, %v386
        %v586 = vpop.permute.xlu0 %585
        %589 = vset.pattern.permute.xlu0 0
        %590 = vperm.xlu0 %589, %v387
        %v591 = vpop.permute.xlu0 %590
        %594 = vset.pattern.permute.xlu0 0
        %595 = vperm.xlu0 %594, %v388
        %v596 = vpop.permute.xlu0 %595
        %599 = vset.pattern.permute.xlu0 0
        %600 = vperm.xlu0 %599, %v389
        %v601 = vpop.permute.xlu0 %600
        %604 = vset.pattern.permute.xlu0 0
        %605 = vperm.xlu0 %604, %v390
        %v606 = vpop.permute.xlu0 %605
        %609 = vset.pattern.permute.xlu0 0
        %610 = vperm.xlu0 %609, %v391
        %v611 = vpop.permute.xlu0 %610
        %614 = vset.pattern.permute.xlu0 0
        %615 = vperm.xlu0 %614, %v392
        %v616 = vpop.permute.xlu0 %615
        %619 = vset.pattern.permute.xlu0 0
        %620 = vperm.xlu0 %619, %v393
        %v621 = vpop.permute.xlu0 %620
        %624 = vset.pattern.permute.xlu0 0
        %625 = vperm.xlu0 %624, %v394
        %v626 = vpop.permute.xlu0 %625
        %629 = vset.pattern.permute.xlu0 0
        %630 = vperm.xlu0 %629, %v395
        %v631 = vpop.permute.xlu0 %630
        %634 = vset.pattern.permute.xlu0 0
        %635 = vperm.xlu0 %634, %v396
        %v636 = vpop.permute.xlu0 %635
        %639 = vset.pattern.permute.xlu0 0
        %640 = vperm.xlu0 %639, %v397
        %v641 = vpop.permute.xlu0 %640
        %644 = vset.pattern.permute.xlu0 0
        %645 = vperm.xlu0 %644, %v398
        %v646 = vpop.permute.xlu0 %645
        %649 = vset.pattern.permute.xlu0 0
        %650 = vperm.xlu0 %649, %v399
        %v651 = vpop.permute.xlu0 %650
        %654 = vset.pattern.permute.xlu0 0
        %655 = vperm.xlu0 %654, %v400
        %v656 = vpop.permute.xlu0 %655
        %658 = vmatpush.msra.mxu0 %v577
        %659 = vmatpush.msra.mxu0 %v576
        %660 = vmatpush.msra.mxu0 %v575
        %661 = vmatpush.msra.mxu0 %v574
        %662 = vmatpush.msra.mxu0 %v573
        %663 = vmatpush.msra.mxu0 %v572
        %664 = vmatpush.msra.mxu0 %v571
        %665 = vmatpush.msra.mxu0 %v570
        %666 = vmatpush.msra.mxu0 %v569
        %667 = vmatpush.msra.mxu0 %v568
        %668 = vmatpush.msra.mxu0 %v567
        %669 = vmatpush.msra.mxu0 %v566
        %670 = vmatpush.msra.mxu0 %v565
        %671 = vmatpush.msra.mxu0 %v564
        %672 = vmatpush.msra.mxu0 %v563
        %673 = vmatpush.msra.mxu0 %v562
        %674 = vmatmul.f32.gmra.mxu0 %v353
        %v675 = vpop.f32.mrf.mxu0
        %v676 = vadd.f32 %v581, %v675
        %677 = vmatmul.f32.gmra.mxu0 %v354
        %v678 = vpop.f32.mrf.mxu0
        %v679 = vadd.f32 %v586, %v678
        %680 = vmatmul.f32.gmra.mxu0 %v355
        %v681 = vpop.f32.mrf.mxu0
        %v682 = vadd.f32 %v591, %v681
        %683 = vmatmul.f32.gmra.mxu0 %v356
        %v684 = vpop.f32.mrf.mxu0
        %v685 = vadd.f32 %v596, %v684
        %686 = vmatmul.f32.gmra.mxu0 %v357
        %v687 = vpop.f32.mrf.mxu0
        %v688 = vadd.f32 %v601, %v687
        %689 = vmatmul.f32.gmra.mxu0 %v358
        %v690 = vpop.f32.mrf.mxu0
        %v691 = vadd.f32 %v606, %v690
        %692 = vmatmul.f32.gmra.mxu0 %v359
        %v693 = vpop.f32.mrf.mxu0
        %v694 = vadd.f32 %v611, %v693
        %695 = vmatmul.f32.gmra.mxu0 %v360
        %v696 = vpop.f32.mrf.mxu0
        %v697 = vadd.f32 %v616, %v696
        %698 = vmatmul.f32.gmra.mxu0 %v361
        %v699 = vpop.f32.mrf.mxu0
        %v700 = vadd.f32 %v621, %v699
        %701 = vmatmul.f32.gmra.mxu0 %v362
        %v702 = vpop.f32.mrf.mxu0
        %v703 = vadd.f32 %v626, %v702
        %704 = vmatmul.f32.gmra.mxu0 %v363
        %v705 = vpop.f32.mrf.mxu0
        %v706 = vadd.f32 %v631, %v705
        %707 = vmatmul.f32.gmra.mxu0 %v364
        %v708 = vpop.f32.mrf.mxu0
        %v709 = vadd.f32 %v636, %v708
        %710 = vmatmul.f32.gmra.mxu0 %v365
        %v711 = vpop.f32.mrf.mxu0
        %v712 = vadd.f32 %v641, %v711
        %713 = vmatmul.f32.gmra.mxu0 %v366
        %v714 = vpop.f32.mrf.mxu0
        %v715 = vadd.f32 %v646, %v714
        %716 = vmatmul.f32.gmra.mxu0 %v367
        %v717 = vpop.f32.mrf.mxu0
        %v718 = vadd.f32 %v651, %v717
        %719 = vmatmul.f32.gmra.mxu0 %v368
        %v720 = vpop.f32.mrf.mxu0
        %v721 = vadd.f32 %v656, %v720
        %722 = vdwg.mxu0
        %v723 = vld [vmem:[%s299] sm:$0x1]
        %v725 = vperm.slane %v723, 0
        %v727 = vmul.f32 %v676, %v725
        %v728 = vmul.f32 %v679, %v725
        %v729 = vmul.f32 %v682, %v725
        %v730 = vmul.f32 %v685, %v725
        %v731 = vmul.f32 %v688, %v725
        %v732 = vmul.f32 %v691, %v725
        %v733 = vmul.f32 %v694, %v725
        %v734 = vmul.f32 %v697, %v725
        %v735 = vmul.f32 %v700, %v725
        %v736 = vmul.f32 %v703, %v725
        %v737 = vmul.f32 %v706, %v725
        %v738 = vmul.f32 %v709, %v725
        %v739 = vmul.f32 %v712, %v725
        %v740 = vmul.f32 %v715, %v725
        %v741 = vmul.f32 %v718, %v725
        %v742 = vmul.f32 %v721, %v725
        %743 = vst [vmem:[%s333] sm:$0xff] %v727
        %744 = vst [vmem:[%s333 + $0x8] sm:$0xff] %v728
        %745 = vst [vmem:[%s333 + $0x10] sm:$0xff] %v729
        %746 = vst [vmem:[%s333 + $0x18] sm:$0xff] %v730
        %747 = vst [vmem:[%s333 + $0x20] sm:$0xff] %v731
        %748 = vst [vmem:[%s333 + $0x28] sm:$0xff] %v732
        %749 = vst [vmem:[%s333 + $0x30] sm:$0xff] %v733
        %750 = vst [vmem:[%s333 + $0x38] sm:$0xff] %v734
        %751 = vst [vmem:[%s333 + $0x40] sm:$0xff] %v735
        %752 = vst [vmem:[%s333 + $0x48] sm:$0xff] %v736
        %753 = vst [vmem:[%s333 + $0x50] sm:$0xff] %v737
        %754 = vst [vmem:[%s333 + $0x58] sm:$0xff] %v738
        %755 = vst [vmem:[%s333 + $0x60] sm:$0xff] %v739
        %756 = vst [vmem:[%s333 + $0x68] sm:$0xff] %v740
        %757 = vst [vmem:[%s333 + $0x70] sm:$0xff] %v741
        %758 = vst [vmem:[%s333 + $0x78] sm:$0xff] %v742
        %s759 = scalar_lea.vmem %s289, 128 [#allocation2]
        %v760 = vld [vmem:[%s759] sm:$0xff]
        %v761 = vld [vmem:[%s759 + $0x8] sm:$0xff]
        %v762 = vld [vmem:[%s759 + $0x10] sm:$0xff]
        %v763 = vld [vmem:[%s759 + $0x18] sm:$0xff]
        %v764 = vld [vmem:[%s759 + $0x20] sm:$0xff]
        %v765 = vld [vmem:[%s759 + $0x28] sm:$0xff]
        %v766 = vld [vmem:[%s759 + $0x30] sm:$0xff]
        %v767 = vld [vmem:[%s759 + $0x38] sm:$0xff]
        %v768 = vld [vmem:[%s759 + $0x40] sm:$0xff]
        %v769 = vld [vmem:[%s759 + $0x48] sm:$0xff]
        %v770 = vld [vmem:[%s759 + $0x50] sm:$0xff]
        %v771 = vld [vmem:[%s759 + $0x58] sm:$0xff]
        %v772 = vld [vmem:[%s759 + $0x60] sm:$0xff]
        %v773 = vld [vmem:[%s759 + $0x68] sm:$0xff]
        %v774 = vld [vmem:[%s759 + $0x70] sm:$0xff]
        %v775 = vld [vmem:[%s759 + $0x78] sm:$0xff]
        %776 = vmatpush.msra.mxu0 %v775
        %777 = vmatpush.msra.mxu0 %v774
        %778 = vmatpush.msra.mxu0 %v773
        %779 = vmatpush.msra.mxu0 %v772
        %780 = vmatpush.msra.mxu0 %v771
        %781 = vmatpush.msra.mxu0 %v770
        %782 = vmatpush.msra.mxu0 %v769
        %783 = vmatpush.msra.mxu0 %v768
        %784 = vmatpush.msra.mxu0 %v767
        %785 = vmatpush.msra.mxu0 %v766
        %786 = vmatpush.msra.mxu0 %v765
        %787 = vmatpush.msra.mxu0 %v764
        %788 = vmatpush.msra.mxu0 %v763
        %789 = vmatpush.msra.mxu0 %v762
        %790 = vmatpush.msra.mxu0 %v761
        %791 = vmatpush.msra.mxu0 %v760
        %792 = vmatmul.f32.gmra.mxu0 %v337
        %v793 = vpop.f32.mrf.mxu0
        %v794 = vadd.f32 %v420, %v793
        %795 = vmatmul.f32.gmra.mxu0 %v338
        %v796 = vpop.f32.mrf.mxu0
        %v797 = vadd.f32 %v425, %v796
        %798 = vmatmul.f32.gmra.mxu0 %v339
        %v799 = vpop.f32.mrf.mxu0
        %v800 = vadd.f32 %v430, %v799
        %801 = vmatmul.f32.gmra.mxu0 %v340
        %v802 = vpop.f32.mrf.mxu0
        %v803 = vadd.f32 %v435, %v802
        %804 = vmatmul.f32.gmra.mxu0 %v341
        %v805 = vpop.f32.mrf.mxu0
        %v806 = vadd.f32 %v440, %v805
        %807 = vmatmul.f32.gmra.mxu0 %v342
        %v808 = vpop.f32.mrf.mxu0
        %v809 = vadd.f32 %v445, %v808
        %810 = vmatmul.f32.gmra.mxu0 %v343
        %v811 = vpop.f32.mrf.mxu0
        %v812 = vadd.f32 %v450, %v811
        %813 = vmatmul.f32.gmra.mxu0 %v344
        %v814 = vpop.f32.mrf.mxu0
        %v815 = vadd.f32 %v455, %v814
        %816 = vmatmul.f32.gmra.mxu0 %v345
        %v817 = vpop.f32.mrf.mxu0
        %v818 = vadd.f32 %v460, %v817
        %819 = vmatmul.f32.gmra.mxu0 %v346
        %v820 = vpop.f32.mrf.mxu0
        %v821 = vadd.f32 %v465, %v820
        %822 = vmatmul.f32.gmra.mxu0 %v347
        %v823 = vpop.f32.mrf.mxu0
        %v824 = vadd.f32 %v470, %v823
        %825 = vmatmul.f32.gmra.mxu0 %v348
        %v826 = vpop.f32.mrf.mxu0
        %v827 = vadd.f32 %v475, %v826
        %828 = vmatmul.f32.gmra.mxu0 %v349
        %v829 = vpop.f32.mrf.mxu0
        %v830 = vadd.f32 %v480, %v829
        %831 = vmatmul.f32.gmra.mxu0 %v350
        %v832 = vpop.f32.mrf.mxu0
        %v833 = vadd.f32 %v485, %v832
        %834 = vmatmul.f32.gmra.mxu0 %v351
        %v835 = vpop.f32.mrf.mxu0
        %v836 = vadd.f32 %v490, %v835
        %837 = vmatmul.f32.gmra.mxu0 %v352
        %v838 = vpop.f32.mrf.mxu0
        %v839 = vadd.f32 %v495, %v838
        %840 = vdwg.mxu0
        %v841 = vmax.f32 %v794, 0.0
        %v842 = vmax.f32 %v797, 0.0
        %v843 = vmax.f32 %v800, 0.0
        %v844 = vmax.f32 %v803, 0.0
        %v845 = vmax.f32 %v806, 0.0
        %v846 = vmax.f32 %v809, 0.0
        %v847 = vmax.f32 %v812, 0.0
        %v848 = vmax.f32 %v815, 0.0
        %v849 = vmax.f32 %v818, 0.0
        %v850 = vmax.f32 %v821, 0.0
        %v851 = vmax.f32 %v824, 0.0
        %v852 = vmax.f32 %v827, 0.0
        %v853 = vmax.f32 %v830, 0.0
        %v854 = vmax.f32 %v833, 0.0
        %v855 = vmax.f32 %v836, 0.0
        %v856 = vmax.f32 %v839, 0.0
        %857 = vmatpush.msra.mxu0 %v856
        %858 = vmatpush.msra.mxu0 %v855
        %859 = vmatpush.msra.mxu0 %v854
        %860 = vmatpush.msra.mxu0 %v853
        %861 = vmatpush.msra.mxu0 %v852
        %862 = vmatpush.msra.mxu0 %v851
        %863 = vmatpush.msra.mxu0 %v850
        %864 = vmatpush.msra.mxu0 %v849
        %865 = vmatpush.msra.mxu0 %v848
        %866 = vmatpush.msra.mxu0 %v847
        %867 = vmatpush.msra.mxu0 %v846
        %868 = vmatpush.msra.mxu0 %v845
        %869 = vmatpush.msra.mxu0 %v844
        %870 = vmatpush.msra.mxu0 %v843
        %871 = vmatpush.msra.mxu0 %v842
        %872 = vmatpush.msra.mxu0 %v841
        %873 = vmatmul.f32.gmra.mxu0 %v353
        %v874 = vpop.f32.mrf.mxu0
        %v875 = vadd.f32 %v581, %v874
        %876 = vmatmul.f32.gmra.mxu0 %v354
        %v877 = vpop.f32.mrf.mxu0
        %v878 = vadd.f32 %v586, %v877
        %879 = vmatmul.f32.gmra.mxu0 %v355
        %v880 = vpop.f32.mrf.mxu0
        %v881 = vadd.f32 %v591, %v880
        %882 = vmatmul.f32.gmra.mxu0 %v356
        %v883 = vpop.f32.mrf.mxu0
        %v884 = vadd.f32 %v596, %v883
        %885 = vmatmul.f32.gmra.mxu0 %v357
        %v886 = vpop.f32.mrf.mxu0
        %v887 = vadd.f32 %v601, %v886
        %888 = vmatmul.f32.gmra.mxu0 %v358
        %v889 = vpop.f32.mrf.mxu0
        %v890 = vadd.f32 %v606, %v889
        %891 = vmatmul.f32.gmra.mxu0 %v359
        %v892 = vpop.f32.mrf.mxu0
        %v893 = vadd.f32 %v611, %v892
        %894 = vmatmul.f32.gmra.mxu0 %v360
        %v895 = vpop.f32.mrf.mxu0
        %v896 = vadd.f32 %v616, %v895
        %897 = vmatmul.f32.gmra.mxu0 %v361
        %v898 = vpop.f32.mrf.mxu0
        %v899 = vadd.f32 %v621, %v898
        %900 = vmatmul.f32.gmra.mxu0 %v362
        %v901 = vpop.f32.mrf.mxu0
        %v902 = vadd.f32 %v626, %v901
        %903 = vmatmul.f32.gmra.mxu0 %v363
        %v904 = vpop.f32.mrf.mxu0
        %v905 = vadd.f32 %v631, %v904
        %906 = vmatmul.f32.gmra.mxu0 %v364
        %v907 = vpop.f32.mrf.mxu0
        %v908 = vadd.f32 %v636, %v907
        %909 = vmatmul.f32.gmra.mxu0 %v365
        %v910 = vpop.f32.mrf.mxu0
        %v911 = vadd.f32 %v641, %v910
        %912 = vmatmul.f32.gmra.mxu0 %v366
        %v913 = vpop.f32.mrf.mxu0
        %v914 = vadd.f32 %v646, %v913
        %915 = vmatmul.f32.gmra.mxu0 %v367
        %v916 = vpop.f32.mrf.mxu0
        %v917 = vadd.f32 %v651, %v916
        %918 = vmatmul.f32.gmra.mxu0 %v368
        %v919 = vpop.f32.mrf.mxu0
        %v920 = vadd.f32 %v656, %v919
        %921 = vdwg.mxu0
        %s922 = scalar_lea.vmem %s299, 1 [#allocation5]
        %v923 = vld [vmem:[%s922] sm:$0x1]
        %v925 = vperm.slane %v923, 0
        %v927 = vmul.f32 %v875, %v925
        %v928 = vmul.f32 %v878, %v925
        %v929 = vmul.f32 %v881, %v925
        %v930 = vmul.f32 %v884, %v925
        %v931 = vmul.f32 %v887, %v925
        %v932 = vmul.f32 %v890, %v925
        %v933 = vmul.f32 %v893, %v925
        %v934 = vmul.f32 %v896, %v925
        %v935 = vmul.f32 %v899, %v925
        %v936 = vmul.f32 %v902, %v925
        %v937 = vmul.f32 %v905, %v925
        %v938 = vmul.f32 %v908, %v925
        %v939 = vmul.f32 %v911, %v925
        %v940 = vmul.f32 %v914, %v925
        %v941 = vmul.f32 %v917, %v925
        %v942 = vmul.f32 %v920, %v925
        %s943 = scalar_lea.vmem %s333, 128 [#allocation7]
        %944 = vst [vmem:[%s943] sm:$0xff] %v927
        %945 = vst [vmem:[%s943 + $0x8] sm:$0xff] %v928
        %946 = vst [vmem:[%s943 + $0x10] sm:$0xff] %v929
        %947 = vst [vmem:[%s943 + $0x18] sm:$0xff] %v930
        %948 = vst [vmem:[%s943 + $0x20] sm:$0xff] %v931
        %949 = vst [vmem:[%s943 + $0x28] sm:$0xff] %v932
        %950 = vst [vmem:[%s943 + $0x30] sm:$0xff] %v933
        %951 = vst [vmem:[%s943 + $0x38] sm:$0xff] %v934
        %952 = vst [vmem:[%s943 + $0x40] sm:$0xff] %v935
        %953 = vst [vmem:[%s943 + $0x48] sm:$0xff] %v936
        %954 = vst [vmem:[%s943 + $0x50] sm:$0xff] %v937
        %955 = vst [vmem:[%s943 + $0x58] sm:$0xff] %v938
        %956 = vst [vmem:[%s943 + $0x60] sm:$0xff] %v939
        %957 = vst [vmem:[%s943 + $0x68] sm:$0xff] %v940
        %958 = vst [vmem:[%s943 + $0x70] sm:$0xff] %v941
        %959 = vst [vmem:[%s943 + $0x78] sm:$0xff] %v942
        %s960 = sand.u32 %s188, 1
        %s961 = scalar_lea.sflag [#allocation4], %s960
        %s962 = sand.u32 %s188, 1
        %s963 = smul.addr %s962, 256
        %s964 = scalar_lea.vmem [#allocation7], %s963
        // Predicated region
        $region53: #{tpu_custom_call.1} parent=43 // pred_check
          %p965 = pneg %p198
        $region54: #{tpu_custom_call.1} parent=43 // pred_check_branch
          %967 = sbr.rel (%p965) target = $region56
        $region55: #{tpu_custom_call.1} parent=43 // pred_region
          %s968 = smul.u32 2, %s30
          %970 = vsyncadd %s961, 0
          %s971 = smul.addr %s968, 16
          %s972 = sadd.s32 %s31, %s971
          %s973 = smul.addr %s972, 8
          %s974 = scalar_lea.hbm %s6, %s973
          %s975 = sshll.u32 %s964, 4
          %s976 = int_to_ptr.vmem [resolvable:$true] %s975
          %s977 = sshll.u32 %s974, 4
          %s978 = int_to_ptr.hbm [resolvable:$true] %s977
          %983 = dma.vmem_to_hbm [thread:$0]  %s976, 4096, %s978, %s961, 128, 128, 8
        $region56: #{tpu_custom_call.1} parent=43 // pred_fallthru
          _
      $region44: #{tpu_custom_call.1} parent=5 // pred_fallthru
        _
      %p984 = scmp.le.s32.totalorder 2, %s21
      // Predicated region
      $region57: #{tpu_custom_call.1} parent=5 // pred_check
        %p985 = pneg %p984
      $region58: #{tpu_custom_call.1} parent=5 // pred_check_branch
        %987 = sbr.rel (%p985) target = $region60
      $region59: #{tpu_custom_call.1} parent=5 // pred_region
        %s988 = ssub.s32 %s21, 2
        // Predicated region
        $region61: #{tpu_custom_call.1} parent=59 // pred_check
          %p989 = pneg %p204
        $region62: #{tpu_custom_call.1} parent=59 // pred_check_branch
          %991 = sbr.rel (%p989) target = $region64
        $region63: #{tpu_custom_call.1} parent=59 // pred_region
          %s992 = sand.u32 %s189, 1
          %s993 = scalar_lea.sflag [#allocation4], %s992
          %s994 = sand.u32 %s189, 1
          %s995 = smul.addr %s994, 256
          %s996 = scalar_lea.vmem [#allocation7], %s995
          %998 = dma.done %s993, 4096
        $region64: #{tpu_custom_call.1} parent=59 // pred_fallthru
          _
      $region60: #{tpu_custom_call.1} parent=5 // pred_fallthru
        _
    $region6: #{tpu_custom_call.1} parent=1 // loop_footer
      %s25 = sadd.s32 1, %s21
    $region7: #{tpu_custom_call.1} parent=1 // loop_footer_branch
      %20 = sbr.rel target = $region3
    $region8: #{tpu_custom_call.1} parent=1 // loop_exit
      _
    %999 = vsyncpa [#allocation3], 1
    %s1000 = scalar_lea.sflag [#allocation3], 1
    %1001 = vsyncpa %s1000, 1
    %1002 = vsyncpa [#allocation6], 1
    %s1003 = scalar_lea.sflag [#allocation6], 1
    %1004 = vsyncpa %s1003, 1
    %1005 = vsyncpa [#allocation4], 1
    %s1006 = scalar_lea.sflag [#allocation4], 1
    %1007 = vsyncpa %s1006, 1

</llo_original>
